<compile_context>
chip_gen: v6e
topology: v6e:2x2x1
jax: 0.10.0
libtpu: 0.0.40
codegen_flags: <defaults>
</compile_context>

<pallas_src>
import jax
import jax.numpy as jnp
from jax.experimental import pallas as pl
from jax.experimental.pallas import tpu as pltpu

_LANE = 128


# ----------------------------------------------------------------------------
# Fused kernel: hidden stack + classifier epilogue.
# Grid axes: (batch_tile b, layer l, output-feature tile n) — l, n are sequential.
# ----------------------------------------------------------------------------
def _large_mlp_kernel(x_ref, w_ref, b_ref, wout_ref, bout_ref, out_ref,
                      cur_ref, nxt_ref):
    layer = pl.program_id(1)
    ntile = pl.program_id(2)
    num_layers = pl.num_programs(1)
    num_ntiles = pl.num_programs(2)

    # Load this batch tile's input into the resident activation buffer once.
    @pl.when(jnp.logical_and(layer == 0, ntile == 0))
    def _():
        cur_ref[...] = x_ref[...].astype(jnp.float32)

    tn = w_ref.shape[1]
    col = pl.multiple_of(ntile * tn, _LANE)

    # y[:, n-tile] = relu(cur @ W[l][:, n-tile] + b[l][n-tile]); f32 accumulation,
    # bf16 operands on the MXU.
    a = cur_ref[...].astype(w_ref.dtype)                             # (bt, D)
    h = jnp.dot(a, w_ref[...], preferred_element_type=jnp.float32)   # (bt, tn)
    h = jnp.maximum(h + b_ref[...], 0.0)                             # (1, tn) bcast
    nxt_ref[:, pl.ds(col, tn)] = h

    # Once all output columns of this layer are done, promote next -> current
    # (not needed after the final hidden layer).
    @pl.when(jnp.logical_and(ntile == num_ntiles - 1, layer < num_layers - 1))
    def _():
        cur_ref[...] = nxt_ref[...]

    # Fused classifier epilogue on the very last grid step of this batch tile.
    @pl.when(jnp.logical_and(layer == num_layers - 1, ntile == num_ntiles - 1))
    def _():
        final = nxt_ref[...].astype(wout_ref.dtype)
        logits = jnp.dot(final, wout_ref[...], preferred_element_type=jnp.float32)
        out_ref[...] = (logits + bout_ref[...]).astype(out_ref.dtype)


# ----------------------------------------------------------------------------
# Wrapper
# ----------------------------------------------------------------------------
def _round_up(x, m):
    return ((x + m - 1) // m) * m


def _pick_feature_tile(d, max_tile=1024):
    for cand in (max_tile, 512, 256, 128):
        if cand <= d and d % cand == 0:
            return cand
    return d  # odd hidden dim: single full-width tile


def _pick_batch_tile(b):
    for cand in (256, 128):
        if b > cand and b % cand == 0:
            return cand
    return b


def large_mlp_forward(x, params):
    """x: (B, D) f32.  params = (w_stack (L,D,D) bf16, b_stack (L,1,D) f32,
    w_out (D,C) bf16, b_out (1,C) f32); weights stored (in_features, out_features)."""
    w_stack, b_stack, w_out, b_out = params
    B, d_in = x.shape
    L, D, D2 = w_stack.shape
    # NOTE: the fused stack requires input_dim == hidden_dim (true for LargeMLP
    # defaults where both are 1024).
    assert d_in == D == D2, "fused stack requires input_dim == hidden_dim"
    C = w_out.shape[1]
    C_pad = _round_up(max(C, _LANE), _LANE)

    # Lane-dense classifier: pad to 128 output lanes, slice back afterwards.
    w_out_p = jnp.zeros((D, C_pad), w_out.dtype).at[:, :C].set(w_out)
    b_out_p = jnp.zeros((1, C_pad), b_out.dtype).at[:, :C].set(b_out)

    bt = _pick_batch_tile(B)
    tn = _pick_feature_tile(D)
    n_btiles, n_ntiles = B // bt, D // tn

    # Rough VMEM budget (double buffers included); raise the scoped limit only if we
    # would get close to the most conservative default (v5e: 16 MiB), capped for v7x.
    wbytes = jnp.dtype(w_stack.dtype).itemsize
    est = (2 * D * tn * wbytes          # hidden-weight tile (double-buffered)
           + 2 * tn * 4                 # bias tile
           + 2 * bt * D * 4             # x block
           + 2 * D * C_pad * wbytes     # resident classifier weight
           + 2 * C_pad * 4              # resident classifier bias
           + 2 * bt * C_pad * 4         # logits block
           + 2 * bt * D * 4)            # cur/nxt activation scratch
    vmem_limit = None
    if est > 12 * 1024 * 1024:
        vmem_limit = int(min(max(2 * est, 32 * 1024 * 1024), 48 * 1024 * 1024))

    out = pl.pallas_call(
        _large_mlp_kernel,
        out_shape=jax.ShapeDtypeStruct((B, C_pad), jnp.float32),
        grid_spec=pltpu.PrefetchScalarGridSpec(
            num_scalar_prefetch=0,
            grid=(n_btiles, L, n_ntiles),
            in_specs=[
                pl.BlockSpec((bt, D), lambda b, l, n: (b, 0)),           # x (per batch tile)
                pl.BlockSpec((None, D, tn), lambda b, l, n: (l, 0, n)),  # W[l][:, n-tile]
                pl.BlockSpec((None, 1, tn), lambda b, l, n: (l, 0, n)),  # b[l][n-tile]
                pl.BlockSpec((D, C_pad), lambda b, l, n: (0, 0)),        # classifier W (resident)
                pl.BlockSpec((1, C_pad), lambda b, l, n: (0, 0)),        # classifier b (resident)
            ],
            out_specs=pl.BlockSpec((bt, C_pad), lambda b, l, n: (b, 0)),
            scratch_shapes=[
                pltpu.VMEM((bt, D), jnp.float32),   # current activation (carry)
                pltpu.VMEM((bt, D), jnp.float32),   # next activation
            ],
        ),
        compiler_params=pltpu.CompilerParams(
            dimension_semantics=("parallel", "arbitrary", "arbitrary"),
            vmem_limit_bytes=vmem_limit),
    )(x, w_stack, b_stack, w_out_p, b_out_p)

    return out[:, :C]


# ----------------------------------------------------------------------------
# Params & reference
# ----------------------------------------------------------------------------
def init_params(key, input_dim, hidden_dim, num_layers, num_classes,
                weight_dtype=jnp.bfloat16):
    assert input_dim == hidden_dim, "fused stack requires input_dim == hidden_dim"
    k_w, k_b, k_wo, k_bo = jax.random.split(key, 4)
    bound = 1.0 / float(hidden_dim) ** 0.5  # PyTorch nn.Linear default init range
    # Weights streamed in bf16 (DMA-bound regime); biases and accumulation stay f32.
    w_stack = jax.random.uniform(
        k_w, (num_layers, hidden_dim, hidden_dim),
        minval=-bound, maxval=bound, dtype=jnp.float32).astype(weight_dtype)
    b_stack = jax.random.uniform(
        k_b, (num_layers, 1, hidden_dim),
        minval=-bound, maxval=bound, dtype=jnp.float32)
    w_out = jax.random.uniform(
        k_wo, (hidden_dim, num_classes),
        minval=-bound, maxval=bound, dtype=jnp.float32).astype(weight_dtype)
    b_out = jax.random.uniform(
        k_bo, (1, num_classes),
        minval=-bound, maxval=bound, dtype=jnp.float32)
    return w_stack, b_stack, w_out, b_out


def reference_forward(x, params):
    """Pure-JAX reference with the same mixed-precision arithmetic as the kernel."""
    w_stack, b_stack, w_out, b_out = params
    h = x.astype(jnp.float32)
    for l in range(w_stack.shape[0]):
        h = jnp.dot(h.astype(w_stack.dtype), w_stack[l],
                    preferred_element_type=jnp.float32) + b_stack[l]
        h = jnp.maximum(h, 0.0)
    return jnp.dot(h.astype(w_out.dtype), w_out,
                   preferred_element_type=jnp.float32) + b_out


if __name__ == "__main__":
    # Small shapes consistent with the module's structure (defaults: 1024/1024/32/10).
    batch, dim, num_layers, num_classes = 8, 256, 4, 10

    key = jax.random.PRNGKey(0)
    k_x, k_p = jax.random.split(key)
    x = jax.random.normal(k_x, (batch, dim), dtype=jnp.float32)
    params = init_params(k_p, dim, dim, num_layers, num_classes)

    fwd = jax.jit(large_mlp_forward)
    out = jax.block_until_ready(fwd(x, params))
    ref = jax.block_until_ready(reference_forward(x, params))

    assert out.shape == (batch, num_classes)
    max_err = float(jnp.max(jnp.abs(out - ref)))
    assert jnp.allclose(out, ref, atol=2e-2, rtol=2e-2), f"max_err={max_err}"
    print("KERNEL_OK")
</pallas_src>

<mosaic_0001>
module attributes {stable_mosaic.version = 11 : i64} {
  func.func @_large_mlp_kernel(%arg0: i32, %arg1: i32, %arg2: i32, %arg3: memref<8x256xf32, #tpu.memory_space<vmem>>, %arg4: memref<1x256x256xbf16, #tpu.memory_space<vmem>>, %arg5: memref<1x1x256xf32, #tpu.memory_space<vmem>>, %arg6: memref<256x128xbf16, #tpu.memory_space<vmem>>, %arg7: memref<1x128xf32, #tpu.memory_space<vmem>>, %arg8: memref<8x128xf32, #tpu.memory_space<vmem>>, %arg9: memref<8x256xf32, #tpu.memory_space<vmem>>, %arg10: memref<8x256xf32, #tpu.memory_space<vmem>>) attributes {dimension_semantics = [#tpu.dimension_semantics<parallel>, #tpu.dimension_semantics<arbitrary>, #tpu.dimension_semantics<arbitrary>], iteration_bounds = array<i64: 1, 4, 1>, scalar_prefetch = 0 : i64, scratch_operands = 2 : i64, tpu.core_type = #tpu.core_type<tc>, window_params = [{transform_indices = @transform_0, window_bounds = array<i64: 8, 256>}, {transform_indices = @transform_1, window_bounds = array<i64: 1, 256, 256>}, {transform_indices = @transform_2, window_bounds = array<i64: 1, 1, 256>}, {pipeline_mode = #tpu.pipeline_mode<synchronous>, transform_indices = @transform_3, window_bounds = array<i64: 256, 128>}, {pipeline_mode = #tpu.pipeline_mode<synchronous>, transform_indices = @transform_4, window_bounds = array<i64: 1, 128>}, {transform_indices = @transform_5, window_bounds = array<i64: 8, 128>}]} {
    %c0_i32 = arith.constant 0 : i32
    %0 = arith.cmpi eq, %arg1, %c0_i32 : i32
    %c0_i32_0 = arith.constant 0 : i32
    %1 = arith.cmpi eq, %arg2, %c0_i32_0 : i32
    %2 = arith.andi %0, %1 : i1
    %3 = arith.extui %2 : i1 to i32
    %c0_i32_1 = arith.constant 0 : i32
    %4 = arith.cmpi ne, %3, %c0_i32_1 : i32
    scf.if %4 {
      %c0_16 = arith.constant 0 : index
      %c0_17 = arith.constant 0 : index
      %30 = vector.load %arg3[%c0_16, %c0_17] : memref<8x256xf32, #tpu.memory_space<vmem>>, vector<8x256xf32>
      %c0_18 = arith.constant 0 : index
      %c0_19 = arith.constant 0 : index
      %31 = vector.load %arg9[%c0_18, %c0_19] : memref<8x256xf32, #tpu.memory_space<vmem>>, vector<8x256xf32>
      tpu.vector_store %arg9[%c0_18, %c0_19], %30 {strides = array<i32>} : memref<8x256xf32, #tpu.memory_space<vmem>>, vector<8x256xf32>,
    } else {
    }
    %c256_i32 = arith.constant 256 : i32
    %5 = arith.muli %arg2, %c256_i32 : i32
    %6 = tpu.assume_multiple %5, 128 : i32
    %c0 = arith.constant 0 : index
    %c0_2 = arith.constant 0 : index
    %7 = vector.load %arg9[%c0, %c0_2] : memref<8x256xf32, #tpu.memory_space<vmem>>, vector<8x256xf32>
    %8 = arith.truncf %7 : vector<8x256xf32> to vector<8x256xbf16>
    %c0_3 = arith.constant 0 : index
    %c0_4 = arith.constant 0 : index
    %c0_5 = arith.constant 0 : index
    %9 = vector.load %arg4[%c0_3, %c0_4, %c0_5] : memref<1x256x256xbf16, #tpu.memory_space<vmem>>, vector<1x256x256xbf16>
    %10 = vector.shape_cast %9 : vector<1x256x256xbf16> to vector<256x256xbf16>
    %cst = arith.constant dense<0.000000e+00> : vector<8x256xf32>
    %11 = tpu.matmul %8, %10, %cst {dimension_numbers = #tpu.dot_dimension_numbers<[1], [0], [0], [1], [0, 0, 1, 1], [], []>} : vector<8x256xbf16>, vector<256x256xbf16>, vector<8x256xf32> -> vector<8x256xf32>
    %c0_6 = arith.constant 0 : index
    %c0_7 = arith.constant 0 : index
    %c0_8 = arith.constant 0 : index
    %12 = vector.load %arg5[%c0_6, %c0_7, %c0_8] : memref<1x1x256xf32, #tpu.memory_space<vmem>>, vector<1x1x256xf32>
    %13 = vector.shape_cast %12 : vector<1x1x256xf32> to vector<1x256xf32>
    %14 = vector.broadcast %13 : vector<1x256xf32> to vector<8x256xf32>
    %15 = arith.addf %11, %14 : vector<8x256xf32>
    %cst_9 = arith.constant 0.000000e+00 : f32
    %16 = vector.broadcast %cst_9 : f32 to vector<8x256xf32>
    %17 = arith.maximumf %15, %16 : vector<8x256xf32>
    %c0_10 = arith.constant 0 : index
    %18 = arith.index_cast %6 : i32 to index
    %19 = vector.load %arg10[%c0_10, %18] : memref<8x256xf32, #tpu.memory_space<vmem>>, vector<8x256xf32>
    tpu.vector_store %arg10[%c0_10, %18], %17 {strides = array<i32>} : memref<8x256xf32, #tpu.memory_space<vmem>>, vector<8x256xf32>,
    %c0_i32_11 = arith.constant 0 : i32
    %20 = arith.cmpi eq, %arg2, %c0_i32_11 : i32
    %c3_i32 = arith.constant 3 : i32
    %21 = arith.cmpi slt, %arg1, %c3_i32 : i32
    %22 = arith.andi %20, %21 : i1
    %23 = arith.extui %22 : i1 to i32
    %c0_i32_12 = arith.constant 0 : i32
    %24 = arith.cmpi ne, %23, %c0_i32_12 : i32
    scf.if %24 {
      %c0_16 = arith.constant 0 : index
      %c0_17 = arith.constant 0 : index
      %30 = vector.load %arg10[%c0_16, %c0_17] : memref<8x256xf32, #tpu.memory_space<vmem>>, vector<8x256xf32>
      %c0_18 = arith.constant 0 : index
      %c0_19 = arith.constant 0 : index
      %31 = vector.load %arg9[%c0_18, %c0_19] : memref<8x256xf32, #tpu.memory_space<vmem>>, vector<8x256xf32>
      tpu.vector_store %arg9[%c0_18, %c0_19], %30 {strides = array<i32>} : memref<8x256xf32, #tpu.memory_space<vmem>>, vector<8x256xf32>,
    } else {
    }
    %c3_i32_13 = arith.constant 3 : i32
    %25 = arith.cmpi eq, %arg1, %c3_i32_13 : i32
    %c0_i32_14 = arith.constant 0 : i32
    %26 = arith.cmpi eq, %arg2, %c0_i32_14 : i32
    %27 = arith.andi %25, %26 : i1
    %28 = arith.extui %27 : i1 to i32
    %c0_i32_15 = arith.constant 0 : i32
    %29 = arith.cmpi ne, %28, %c0_i32_15 : i32
    scf.if %29 {
      %c0_16 = arith.constant 0 : index
      %c0_17 = arith.constant 0 : index
      %30 = vector.load %arg10[%c0_16, %c0_17] : memref<8x256xf32, #tpu.memory_space<vmem>>, vector<8x256xf32>
      %31 = arith.truncf %30 : vector<8x256xf32> to vector<8x256xbf16>
      %c0_18 = arith.constant 0 : index
      %c0_19 = arith.constant 0 : index
      %32 = vector.load %arg6[%c0_18, %c0_19] : memref<256x128xbf16, #tpu.memory_space<vmem>>, vector<256x128xbf16>
      %cst_20 = arith.constant dense<0.000000e+00> : vector<8x128xf32>
      %33 = tpu.matmul %31, %32, %cst_20 {dimension_numbers = #tpu.dot_dimension_numbers<[1], [0], [0], [1], [0, 0, 1, 1], [], []>} : vector<8x256xbf16>, vector<256x128xbf16>, vector<8x128xf32> -> vector<8x128xf32>
      %c0_21 = arith.constant 0 : index
      %c0_22 = arith.constant 0 : index
      %34 = vector.load %arg7[%c0_21, %c0_22] : memref<1x128xf32, #tpu.memory_space<vmem>>, vector<1x128xf32>
      %35 = vector.broadcast %34 : vector<1x128xf32> to vector<8x128xf32>
      %36 = arith.addf %33, %35 : vector<8x128xf32>
      %c0_23 = arith.constant 0 : index
      %c0_24 = arith.constant 0 : index
      %37 = vector.load %arg8[%c0_23, %c0_24] : memref<8x128xf32, #tpu.memory_space<vmem>>, vector<8x128xf32>
      tpu.vector_store %arg8[%c0_23, %c0_24], %36 {strides = array<i32>} : memref<8x128xf32, #tpu.memory_space<vmem>>, vector<8x128xf32>,
    } else {
    }
    return
  }
  func.func @transform_0(%arg0: i32, %arg1: i32, %arg2: i32) -> (i32, i32) {
    %c0_i32 = arith.constant 0 : i32
    %c0_i32_0 = arith.constant 0 : i32
    return %arg0, %c0_i32 : i32, i32
  }
  func.func @transform_1(%arg0: i32, %arg1: i32, %arg2: i32) -> (i32, i32, i32) {
    %c0_i32 = arith.constant 0 : i32
    %c0_i32_0 = arith.constant 0 : i32
    return %arg1, %c0_i32, %arg2 : i32, i32, i32
  }
  func.func @transform_2(%arg0: i32, %arg1: i32, %arg2: i32) -> (i32, i32, i32) {
    %c0_i32 = arith.constant 0 : i32
    %c0_i32_0 = arith.constant 0 : i32
    return %arg1, %c0_i32, %arg2 : i32, i32, i32
  }
  func.func @transform_3(%arg0: i32, %arg1: i32, %arg2: i32) -> (i32, i32) {
    %c0_i32 = arith.constant 0 : i32
    %c0_i32_0 = arith.constant 0 : i32
    %c0_i32_1 = arith.constant 0 : i32
    return %c0_i32, %c0_i32_0 : i32, i32
  }
  func.func @transform_4(%arg0: i32, %arg1: i32, %arg2: i32) -> (i32, i32) {
    %c0_i32 = arith.constant 0 : i32
    %c0_i32_0 = arith.constant 0 : i32
    %c0_i32_1 = arith.constant 0 : i32
    return %c0_i32, %c0_i32_0 : i32, i32
  }
  func.func @transform_5(%arg0: i32, %arg1: i32, %arg2: i32) -> (i32, i32) {
    %c0_i32 = arith.constant 0 : i32
    %c0_i32_0 = arith.constant 0 : i32
    return %arg0, %c0_i32 : i32, i32
  }
}

</mosaic_0001>

<llo_original>
// kernel: large_mlp_forward.1
$region0: #{large_mlp_forward.1}
  #allocation0 [shape = 'u32[]', space=smem, size = 0x4, offset = 0x4, fixed_abs, tag = 'smem constant byte address 0x4 - core index']
  #allocation1 [shape = 'u32[144,128]{1,0:T(1,128)}', space=vmem, size = 0x12000, scoped, tag = 'internal scratch']
  #allocation2 [shape = 'f32[8,256]{1,0:T(8,128)}', space=vmem, size = 0x2000, scoped, tag = 'scratch operand']
  #allocation3 [shape = 'f32[8,256]{1,0:T(8,128)}', space=vmem, size = 0x2000, scoped, tag = 'scratch operand']
  %s0 = inlined_call_operand.vmem [shape: f32[8,256], index: 0, kind: input, shape index: {}]
  %s1 = inlined_call_operand.hbm [shape: bf16[4,256,256], index: 1, kind: input, shape index: {}]
  %s2 = inlined_call_operand.vmem [shape: f32[4,1,256], index: 2, kind: input, shape index: {}]
  %s3 = inlined_call_operand.vmem [shape: bf16[256,128], index: 3, kind: input, shape index: {}]
  %s4 = inlined_call_operand.vmem [shape: f32[1,128], index: 4, kind: input, shape index: {}]
  %s5 = inlined_call_operand.hbm [shape: f32[8,128], index: 5, kind: output, shape index: {}]
  %s6 = sld [smem:[#allocation0]]
  $region69: #{large_mlp_forward.1} parent=0
    _
  %s8 = ssub.s32 1, %s6
  %s9 = scalar_select 0, %s8, %s6
  $region1: #{large_mlp_forward.1} parent=0
    #allocation4 [shape = 'u8[262144]{0}', space=vmem, size = 0x40000, scoped, tag = 'input window, operand 1']
    #allocation5 [shape = 's32[2]{0}', space=sflag, size = 0x8, scoped, tag = 'scoped memory for large_mlp_forward.1']
    #allocation6 [shape = 's32[2]{0}', space=sflag, size = 0x8, scoped, tag = 'scoped memory for large_mlp_forward.1']
    #allocation7 [shape = 'u8[4096]{0}', space=vmem, size = 0x1000, scoped, tag = 'output window, operand 0, single buffered']
    %10 = vsyncpa [#allocation5], 0
    %s11 = scalar_lea.sflag [#allocation5], 1
    %12 = vsyncpa %s11, 0
    %13 = vsyncpa [#allocation6], 0
    loop: start=0, step=1, limit=6
    $region2: #{large_mlp_forward.1} parent=1 // loop_pre_header
      _
    $region3: #{large_mlp_forward.1} parent=1 // loop_header
      %s15 = sphi 0, %s19
      %p16 = scmp.ge.s32.totalorder %s15, 6
      %s22 = sphi 0, %s41
      %s23 = sphi 0, %s37
      %s24 = sphi 0, %s33
      %s25 = sphi 0, %s22
      %s26 = sphi 0, %s23
      %s27 = sphi 0, %s24
      %s28 = sphi 0, %s25
      %s29 = sphi 0, %s26
      %s30 = sphi 0, %s27
      %s44 = sphi 0, %s46
      %s47 = sphi 0, %s44
      %s48 = sphi 0, %s47
      %s64 = sphi 0, %s48
      %s72 = sphi 0, %s74
      %s75 = sphi 0, %s72
      %s76 = sphi 0, %s75
      %s92 = sphi 0, %s76
      %s100 = sphi 0, %s102
      %s103 = sphi 0, %s100
      %s104 = sphi 0, %s103
      %s120 = sphi 0, %s104
      %s124 = sphi 0, %s124
      %s126 = sphi 0, %s124
      %s127 = sphi 0, %s126
      %s141 = sphi 0, %s127
      %s145 = sphi 0, %s145
      %s147 = sphi 0, %s145
      %s148 = sphi 0, %s147
      %s162 = sphi 0, %s148
      %s168 = sphi 0, %s170
      %s171 = sphi 0, %s168
      %s172 = sphi 0, %s171
      %s188 = sphi 0, %s172
    $region4: #{large_mlp_forward.1} parent=1 // loop_header_branch
      %18 = sbr.rel (%p16) target = $region8
    $region5: #{large_mlp_forward.1} parent=1 // loop_body
      %s20 = ssub.s32 %s15, 1
      %s21 = ssub.s32 %s15, 2
      %s31 = sadd.s32 1, %s24
      %p32 = scmp.ge.s32.totalorder %s31, 1
      %s33 = scalar_select %p32, 0, %s31
      %s34 = sadd.s32 1, %s23
      %s35 = scalar_select %p32, %s34, %s23
      %p36 = scmp.ge.s32.totalorder %s35, 4
      %s37 = scalar_select %p36, 0, %s35
      %s38 = sadd.s32 1, %s22
      %s39 = scalar_select %p36, %s38, %s22
      %p40 = scmp.ge.s32.totalorder %s39, 1
      %s41 = scalar_select %p40, 0, %s39
      %s42 = ssub.s32 %s22, %s41
      %p43 = scmp.eq.s32.totalorder %s42, 0
      %s45 = sadd.s32 %s44, 1
      %s46 = scalar_select %p43, %s44, %s45
      %p49 = pneg %p43
      %p50 = scmp.eq.s32.totalorder %s15, 3
      %p51 = por %p49, %p50
      %p52 = scmp.ne.s32.totalorder %s44, %s47
      %p53 = scmp.eq.s32.totalorder %s15, 0
      %p54 = por %p52, %p53
      %p55 = scmp.ne.s32.totalorder %s44, %s47
      %p56 = scmp.eq.s32.totalorder %s20, 3
      %p57 = por %p55, %p56
      %p58 = scmp.ne.s32.totalorder %s47, %s48
      %p59 = scmp.eq.s32.totalorder %s20, 0
      %p60 = por %p58, %p59
      %p61 = scmp.ne.s32.totalorder %s47, %s48
      %p62 = scmp.eq.s32.totalorder %s21, 3
      %p63 = por %p61, %p62
      %p65 = scmp.ne.s32.totalorder %s48, %s64
      %p66 = scmp.eq.s32.totalorder %s21, 0
      %p67 = por %p65, %p66
      %s68 = ssub.s32 %s23, %s37
      %s69 = ssub.s32 %s24, %s33
      %s70 = sor.u32 %s68, %s69
      %p71 = scmp.eq.s32.totalorder %s70, 0
      %s73 = sadd.s32 %s72, 1
      %s74 = scalar_select %p71, %s72, %s73
      %p77 = pneg %p71
      %p78 = scmp.eq.s32.totalorder %s15, 3
      %p79 = por %p77, %p78
      %p80 = scmp.ne.s32.totalorder %s72, %s75
      %p81 = scmp.eq.s32.totalorder %s15, 0
      %p82 = por %p80, %p81
      %p83 = scmp.ne.s32.totalorder %s72, %s75
      %p84 = scmp.eq.s32.totalorder %s20, 3
      %p85 = por %p83, %p84
      %p86 = scmp.ne.s32.totalorder %s75, %s76
      %p87 = scmp.eq.s32.totalorder %s20, 0
      %p88 = por %p86, %p87
      %p89 = scmp.ne.s32.totalorder %s75, %s76
      %p90 = scmp.eq.s32.totalorder %s21, 3
      %p91 = por %p89, %p90
      %p93 = scmp.ne.s32.totalorder %s76, %s92
      %p94 = scmp.eq.s32.totalorder %s21, 0
      %p95 = por %p93, %p94
      %s96 = ssub.s32 %s23, %s37
      %s97 = ssub.s32 %s24, %s33
      %s98 = sor.u32 %s96, %s97
      %p99 = scmp.eq.s32.totalorder %s98, 0
      %s101 = sadd.s32 %s100, 1
      %s102 = scalar_select %p99, %s100, %s101
      %p105 = pneg %p99
      %p106 = scmp.eq.s32.totalorder %s15, 3
      %p107 = por %p105, %p106
      %p108 = scmp.ne.s32.totalorder %s100, %s103
      %p109 = scmp.eq.s32.totalorder %s15, 0
      %p110 = por %p108, %p109
      %p111 = scmp.ne.s32.totalorder %s100, %s103
      %p112 = scmp.eq.s32.totalorder %s20, 3
      %p113 = por %p111, %p112
      %p114 = scmp.ne.s32.totalorder %s103, %s104
      %p115 = scmp.eq.s32.totalorder %s20, 0
      %p116 = por %p114, %p115
      %p117 = scmp.ne.s32.totalorder %s103, %s104
      %p118 = scmp.eq.s32.totalorder %s21, 3
      %p119 = por %p117, %p118
      %p121 = scmp.ne.s32.totalorder %s104, %s120
      %p122 = scmp.eq.s32.totalorder %s21, 0
      %p123 = por %p121, %p122
      %s125 = sadd.s32 %s124, 1
      %p128 = scmp.eq.s32.totalorder %s15, 3
      %p129 = scmp.ne.s32.totalorder %s124, %s126
      %p130 = scmp.eq.s32.totalorder %s15, 0
      %p131 = por %p129, %p130
      %p132 = scmp.ne.s32.totalorder %s124, %s126
      %p133 = scmp.eq.s32.totalorder %s20, 3
      %p134 = por %p132, %p133
      %p135 = scmp.ne.s32.totalorder %s126, %s127
      %p136 = scmp.eq.s32.totalorder %s20, 0
      %p137 = por %p135, %p136
      %p138 = scmp.ne.s32.totalorder %s126, %s127
      %p139 = scmp.eq.s32.totalorder %s21, 3
      %p140 = por %p138, %p139
      %p142 = scmp.ne.s32.totalorder %s127, %s141
      %p143 = scmp.eq.s32.totalorder %s21, 0
      %p144 = por %p142, %p143
      %s146 = sadd.s32 %s145, 1
      %p149 = scmp.eq.s32.totalorder %s15, 3
      %p150 = scmp.ne.s32.totalorder %s145, %s147
      %p151 = scmp.eq.s32.totalorder %s15, 0
      %p152 = por %p150, %p151
      %p153 = scmp.ne.s32.totalorder %s145, %s147
      %p154 = scmp.eq.s32.totalorder %s20, 3
      %p155 = por %p153, %p154
      %p156 = scmp.ne.s32.totalorder %s147, %s148
      %p157 = scmp.eq.s32.totalorder %s20, 0
      %p158 = por %p156, %p157
      %p159 = scmp.ne.s32.totalorder %s147, %s148
      %p160 = scmp.eq.s32.totalorder %s21, 3
      %p161 = por %p159, %p160
      %p163 = scmp.ne.s32.totalorder %s148, %s162
      %p164 = scmp.eq.s32.totalorder %s21, 0
      %p165 = por %p163, %p164
      %s166 = ssub.s32 %s22, %s41
      %p167 = scmp.eq.s32.totalorder %s166, 0
      %s169 = sadd.s32 %s168, 1
      %s170 = scalar_select %p167, %s168, %s169
      %p173 = pneg %p167
      %p174 = scmp.eq.s32.totalorder %s15, 3
      %p175 = por %p173, %p174
      %p176 = scmp.ne.s32.totalorder %s168, %s171
      %p177 = scmp.eq.s32.totalorder %s15, 0
      %p178 = por %p176, %p177
      %p179 = scmp.ne.s32.totalorder %s168, %s171
      %p180 = scmp.eq.s32.totalorder %s20, 3
      %p181 = por %p179, %p180
      %p182 = scmp.ne.s32.totalorder %s171, %s172
      %p183 = scmp.eq.s32.totalorder %s20, 0
      %p184 = por %p182, %p183
      %p185 = scmp.ne.s32.totalorder %s171, %s172
      %p186 = scmp.eq.s32.totalorder %s21, 3
      %p187 = por %p185, %p186
      %p189 = scmp.ne.s32.totalorder %s172, %s188
      %p190 = scmp.eq.s32.totalorder %s21, 0
      %p191 = por %p189, %p190
      %p192 = scmp.le.s32.totalorder 1, %s15
      %p193 = scmp.lt.s32.totalorder %s15, 5
      %p194 = pnand %p192, %p193
      %p195 = pneg %p194
      // Predicated region
      $region9: #{large_mlp_forward.1} parent=5 // pred_check
        _
      $region10: #{large_mlp_forward.1} parent=5 // pred_check_branch
        %197 = sbr.rel (%p194) target = $region12
      $region11: #{large_mlp_forward.1} parent=5 // pred_region
        %s198 = ssub.s32 %s15, 1
        // Predicated region
        $region13: #{large_mlp_forward.1} parent=11 // pred_check
          %p199 = pneg %p60
        $region14: #{large_mlp_forward.1} parent=11 // pred_check_branch
          %201 = sbr.rel (%p199) target = $region16
        $region15: #{large_mlp_forward.1} parent=11 // pred_region
          %p202 = scmp.lt.s32.totalorder %s25, 0
          %s203 = scalar_select %p202, %s25, 0
          %s204 = smul.addr %s203, 2
          %s205 = smul.addr %s204, 8
          %s206 = scalar_lea.vmem %s0, %s205
        $region16: #{large_mlp_forward.1} parent=11 // pred_fallthru
          _
        // Predicated region
        $region17: #{large_mlp_forward.1} parent=11 // pred_check
          %p207 = pneg %p137
        $region18: #{large_mlp_forward.1} parent=11 // pred_check_branch
          %209 = sbr.rel (%p207) target = $region20
        $region19: #{large_mlp_forward.1} parent=11 // pred_region
          _
        $region20: #{large_mlp_forward.1} parent=11 // pred_fallthru
          _
        // Predicated region
        $region21: #{large_mlp_forward.1} parent=11 // pred_check
          %p210 = pneg %p158
        $region22: #{large_mlp_forward.1} parent=11 // pred_check_branch
          %212 = sbr.rel (%p210) target = $region24
        $region23: #{large_mlp_forward.1} parent=11 // pred_region
          _
        $region24: #{large_mlp_forward.1} parent=11 // pred_fallthru
          _
      $region12: #{large_mlp_forward.1} parent=5 // pred_fallthru
        _
      %p213 = scmp.lt.s32.totalorder %s15, 4
      // Predicated region
      $region25: #{large_mlp_forward.1} parent=5 // pred_check
        %p214 = pneg %p213
      $region26: #{large_mlp_forward.1} parent=5 // pred_check_branch
        %216 = sbr.rel (%p214) target = $region28
      $region27: #{large_mlp_forward.1} parent=5 // pred_region
        // Predicated region
        $region29: #{large_mlp_forward.1} parent=27 // pred_check
          %p217 = pneg %p82
        $region30: #{large_mlp_forward.1} parent=27 // pred_check_branch
          %219 = sbr.rel (%p217) target = $region32
        $region31: #{large_mlp_forward.1} parent=27 // pred_region
          %s220 = sand.u32 %s72, 1
          %s221 = scalar_lea.sflag [#allocation5], %s220
          %s222 = sand.u32 %s72, 1
          %s223 = smul.addr %s222, 256
          %s224 = scalar_lea.vmem [#allocation4], %s223
          %s225 = smul.u32 2, %s24
          %s227 = ssub.s32 4096, 4096
          %228 = vsyncadd %s221, %s227
          %s229 = smul.addr %s23, 64
          %s230 = sadd.s32 %s225, %s229
          %s231 = smul.addr %s230, 64
          %s232 = scalar_lea.hbm %s1, %s231
          %s233 = sshll.u32 %s224, 4
          %s234 = int_to_ptr.vmem [resolvable:$true] %s233
          %239 = dma.hbm_to_vmem [thread:$0]  %s232, 4096, %s234, %s221, 128, 128, 8
        $region32: #{large_mlp_forward.1} parent=27 // pred_fallthru
          _
        // Predicated region
        $region33: #{large_mlp_forward.1} parent=27 // pred_check
          %p240 = pneg %p110
        $region34: #{large_mlp_forward.1} parent=27 // pred_check_branch
          %242 = sbr.rel (%p240) target = $region36
        $region35: #{large_mlp_forward.1} parent=27 // pred_region
          %s243 = smul.u32 2, %s24
          %p244 = scmp.lt.s32.totalorder %s23, 3
          %s245 = scalar_select %p244, %s23, 3
          %p246 = scmp.lt.s32.totalorder %s243, 1
          %s247 = scalar_select %p246, %s243, 1
          %s248 = smul.addr %s245, 2
          %s249 = sadd.s32 %s247, %s248
          %s250 = scalar_lea.vmem %s2, %s249
          %s251 = smul.u32 2, %s24
        $region36: #{large_mlp_forward.1} parent=27 // pred_fallthru
          _
      $region28: #{large_mlp_forward.1} parent=5 // pred_fallthru
        _
      %p252 = scmp.le.s32.totalorder 1, %s15
      %p253 = scmp.lt.s32.totalorder %s15, 5
      %p254 = pnand %p252, %p253
      %p255 = pneg %p254
      // Predicated region
      $region37: #{large_mlp_forward.1} parent=5 // pred_check
        _
      $region38: #{large_mlp_forward.1} parent=5 // pred_check_branch
        %257 = sbr.rel (%p254) target = $region40
      $region39: #{large_mlp_forward.1} parent=5 // pred_region
        %s258 = ssub.s32 %s15, 1
        %s259 = sand.u32 %s75, 1
        %s260 = scalar_lea.sflag [#allocation5], %s259
        %s261 = sand.u32 %s75, 1
        %s262 = smul.addr %s261, 256
        %s263 = scalar_lea.vmem [#allocation4], %s262
        // Predicated region
        $region41: #{large_mlp_forward.1} parent=39 // pred_check
          %p264 = pneg %p88
        $region42: #{large_mlp_forward.1} parent=39 // pred_check_branch
          %266 = sbr.rel (%p264) target = $region44
        $region43: #{large_mlp_forward.1} parent=39 // pred_region
          %267 = dma.done %s260, 4096
        $region44: #{large_mlp_forward.1} parent=39 // pred_fallthru
          _
        %p268 = scmp.lt.s32.totalorder %s25, 0
        %s269 = scalar_select %p268, %s25, 0
        %s270 = smul.addr %s269, 2
        %s271 = smul.addr %s270, 8
        %s272 = scalar_lea.vmem %s0, %s271
        %p273 = pneg %p60
        %p274 = pneg %p57
        %s275 = sand.u32 %s75, 1
        %s276 = scalar_lea.sflag [#allocation5], %s275
        %s277 = sand.u32 %s75, 1
        %s278 = smul.addr %s277, 256
        %s279 = scalar_lea.vmem [#allocation4], %s278
        %p280 = pneg %p88
        %p281 = pneg %p85
        %s282 = smul.u32 2, %s27
        %p283 = scmp.lt.s32.totalorder %s26, 3
        %s284 = scalar_select %p283, %s26, 3
        %p285 = scmp.lt.s32.totalorder %s282, 1
        %s286 = scalar_select %p285, %s282, 1
        %s287 = smul.addr %s284, 2
        %s288 = sadd.s32 %s286, %s287
        %s289 = scalar_lea.vmem %s2, %s288
        %p290 = pneg %p116
        %p291 = pneg %p113
        %p292 = pneg %p137
        %p293 = pneg %p134
        %p294 = pneg %p158
        %p295 = pneg %p155
        %p296 = pneg %p184
        %p297 = pneg %p181
        %p298 = scmp.lt.s32.totalorder %s25, 0
        %s299 = scalar_select %p298, %s25, 0
        %s300 = smul.addr %s299, 2
        %s301 = smul.addr %s300, 8
        %s302 = scalar_lea.vmem %s0, %s301
        %s303 = smul.u32 2, %s27
        %s304 = smul.u32 2, %s27
        %p305 = scmp.lt.s32.totalorder %s26, 3
        %s306 = scalar_select %p305, %s26, 3
        %p307 = scmp.lt.s32.totalorder %s304, 1
        %s308 = scalar_select %p307, %s304, 1
        %s309 = smul.addr %s306, 2
        %s310 = sadd.s32 %s308, %s309
        %s311 = scalar_lea.vmem %s2, %s310
        %s312 = smul.u32 2, %s27
        %p314 = scmp.eq.s32.totalorder %s26, 0
        %p315 = scmp.eq.s32.totalorder %s27, 0
        %p316 = pnand %p314, %p315
        %p317 = pneg %p316
        // Predicated region
        $region45: #{large_mlp_forward.1} parent=39 // pred_check
          _
        $region46: #{large_mlp_forward.1} parent=39 // pred_check_branch
          %319 = sbr.rel (%p316) target = $region48
        $region47: #{large_mlp_forward.1} parent=39 // pred_region
          %v320 = vld [vmem:[%s302] sm:$0xff]
          %v321 = vld [vmem:[%s302 + $0x8] sm:$0xff]
          %322 = vst [vmem:[#allocation2] sm:$0xff] %v320
          %323 = vst [vmem:[#allocation2 + $0x8] sm:$0xff] %v321
        $region48: #{large_mlp_forward.1} parent=39 // pred_fallthru
          _
        %s324 = smul.u32 %s27, 256
        %v325 = vld [vmem:[#allocation2] sm:$0xff]
        %v326 = vld [vmem:[#allocation2 + $0x8] sm:$0xff]
        %v327 = vpack.c.bf16 %v325, %v325
        %v328 = vpack.c.bf16 %v326, %v326
        %v329 = vld [vmem:[%s263] sm:$0xff]
        %v330 = vld [vmem:[%s263 + $0x8] sm:$0xff]
        %v331 = vld [vmem:[%s263 + $0x10] sm:$0xff]
        %v332 = vld [vmem:[%s263 + $0x18] sm:$0xff]
        %v333 = vld [vmem:[%s263 + $0x20] sm:$0xff]
        %v334 = vld [vmem:[%s263 + $0x28] sm:$0xff]
        %v335 = vld [vmem:[%s263 + $0x30] sm:$0xff]
        %v336 = vld [vmem:[%s263 + $0x38] sm:$0xff]
        %v337 = vld [vmem:[%s263 + $0x40] sm:$0xff]
        %v338 = vld [vmem:[%s263 + $0x48] sm:$0xff]
        %v339 = vld [vmem:[%s263 + $0x50] sm:$0xff]
        %v340 = vld [vmem:[%s263 + $0x58] sm:$0xff]
        %v341 = vld [vmem:[%s263 + $0x60] sm:$0xff]
        %v342 = vld [vmem:[%s263 + $0x68] sm:$0xff]
        %v343 = vld [vmem:[%s263 + $0x70] sm:$0xff]
        %v344 = vld [vmem:[%s263 + $0x78] sm:$0xff]
        %v345 = vld [vmem:[%s263 + $0x80] sm:$0xff]
        %v346 = vld [vmem:[%s263 + $0x88] sm:$0xff]
        %v347 = vld [vmem:[%s263 + $0x90] sm:$0xff]
        %v348 = vld [vmem:[%s263 + $0x98] sm:$0xff]
        %v349 = vld [vmem:[%s263 + $0xa0] sm:$0xff]
        %v350 = vld [vmem:[%s263 + $0xa8] sm:$0xff]
        %v351 = vld [vmem:[%s263 + $0xb0] sm:$0xff]
        %v352 = vld [vmem:[%s263 + $0xb8] sm:$0xff]
        %v353 = vld [vmem:[%s263 + $0xc0] sm:$0xff]
        %v354 = vld [vmem:[%s263 + $0xc8] sm:$0xff]
        %v355 = vld [vmem:[%s263 + $0xd0] sm:$0xff]
        %v356 = vld [vmem:[%s263 + $0xd8] sm:$0xff]
        %v357 = vld [vmem:[%s263 + $0xe0] sm:$0xff]
        %v358 = vld [vmem:[%s263 + $0xe8] sm:$0xff]
        %v359 = vld [vmem:[%s263 + $0xf0] sm:$0xff]
        %v360 = vld [vmem:[%s263 + $0xf8] sm:$0xff]
        %v361 = vld [vmem:[%s311] sm:$0x3]
        %v363 = vlaneseq
        %v364 = vshrl.u32 %v363, 7
        %v365 = vsub.s32 0, %v364
        %v366 = vrot.slane %v361, %v365
        %v367 = vlaneseq
        %v368 = vshrl.u32 %v367, 7
        %v369 = vsub.s32 1, %v368
        %v370 = vrot.slane %v361, %v369
        %v405 = vunpack.c.l.b16 %v329
        %v406 = vunpack.c.h.b16 %v329
        %v407 = vunpack.c.l.b16 %v330
        %v408 = vunpack.c.h.b16 %v330
        %v409 = vunpack.c.l.b16 %v331
        %v410 = vunpack.c.h.b16 %v331
        %v411 = vunpack.c.l.b16 %v332
        %v412 = vunpack.c.h.b16 %v332
        %v413 = vunpack.c.l.b16 %v333
        %v414 = vunpack.c.h.b16 %v333
        %v415 = vunpack.c.l.b16 %v334
        %v416 = vunpack.c.h.b16 %v334
        %v417 = vunpack.c.l.b16 %v335
        %v418 = vunpack.c.h.b16 %v335
        %v419 = vunpack.c.l.b16 %v336
        %v420 = vunpack.c.h.b16 %v336
        %v421 = vunpack.c.l.b16 %v337
        %v422 = vunpack.c.h.b16 %v337
        %v423 = vunpack.c.l.b16 %v338
        %v424 = vunpack.c.h.b16 %v338
        %v425 = vunpack.c.l.b16 %v339
        %v426 = vunpack.c.h.b16 %v339
        %v427 = vunpack.c.l.b16 %v340
        %v428 = vunpack.c.h.b16 %v340
        %v429 = vunpack.c.l.b16 %v341
        %v430 = vunpack.c.h.b16 %v341
        %v431 = vunpack.c.l.b16 %v342
        %v432 = vunpack.c.h.b16 %v342
        %v433 = vunpack.c.l.b16 %v343
        %v434 = vunpack.c.h.b16 %v343
        %v435 = vunpack.c.l.b16 %v344
        %v436 = vunpack.c.h.b16 %v344
        %v437 = vunpack.c.l.b16 %v345
        %v438 = vunpack.c.h.b16 %v345
        %v439 = vunpack.c.l.b16 %v346
        %v440 = vunpack.c.h.b16 %v346
        %v441 = vunpack.c.l.b16 %v347
        %v442 = vunpack.c.h.b16 %v347
        %v443 = vunpack.c.l.b16 %v348
        %v444 = vunpack.c.h.b16 %v348
        %v445 = vunpack.c.l.b16 %v349
        %v446 = vunpack.c.h.b16 %v349
        %v447 = vunpack.c.l.b16 %v350
        %v448 = vunpack.c.h.b16 %v350
        %v449 = vunpack.c.l.b16 %v351
        %v450 = vunpack.c.h.b16 %v351
        %v451 = vunpack.c.l.b16 %v352
        %v452 = vunpack.c.h.b16 %v352
        %v453 = vunpack.c.l.b16 %v353
        %v454 = vunpack.c.h.b16 %v353
        %v455 = vunpack.c.l.b16 %v354
        %v456 = vunpack.c.h.b16 %v354
        %v457 = vunpack.c.l.b16 %v355
        %v458 = vunpack.c.h.b16 %v355
        %v459 = vunpack.c.l.b16 %v356
        %v460 = vunpack.c.h.b16 %v356
        %v461 = vunpack.c.l.b16 %v357
        %v462 = vunpack.c.h.b16 %v357
        %v463 = vunpack.c.l.b16 %v358
        %v464 = vunpack.c.h.b16 %v358
        %v465 = vunpack.c.l.b16 %v359
        %v466 = vunpack.c.h.b16 %v359
        %v467 = vunpack.c.l.b16 %v360
        %v468 = vunpack.c.h.b16 %v360
        %v469 = vpack.c.b16 %v407, %v405
        %v470 = vpack.c.b16 %v408, %v406
        %v471 = vpack.c.b16 %v411, %v409
        %v472 = vpack.c.b16 %v412, %v410
        %v473 = vpack.c.b16 %v415, %v413
        %v474 = vpack.c.b16 %v416, %v414
        %v475 = vpack.c.b16 %v419, %v417
        %v476 = vpack.c.b16 %v420, %v418
        %v477 = vpack.c.b16 %v423, %v421
        %v478 = vpack.c.b16 %v424, %v422
        %v479 = vpack.c.b16 %v427, %v425
        %v480 = vpack.c.b16 %v428, %v426
        %v481 = vpack.c.b16 %v431, %v429
        %v482 = vpack.c.b16 %v432, %v430
        %v483 = vpack.c.b16 %v435, %v433
        %v484 = vpack.c.b16 %v436, %v434
        %v485 = vpack.c.b16 %v439, %v437
        %v486 = vpack.c.b16 %v440, %v438
        %v487 = vpack.c.b16 %v443, %v441
        %v488 = vpack.c.b16 %v444, %v442
        %v489 = vpack.c.b16 %v447, %v445
        %v490 = vpack.c.b16 %v448, %v446
        %v491 = vpack.c.b16 %v451, %v449
        %v492 = vpack.c.b16 %v452, %v450
        %v493 = vpack.c.b16 %v455, %v453
        %v494 = vpack.c.b16 %v456, %v454
        %v495 = vpack.c.b16 %v459, %v457
        %v496 = vpack.c.b16 %v460, %v458
        %v497 = vpack.c.b16 %v463, %v461
        %v498 = vpack.c.b16 %v464, %v462
        %v499 = vpack.c.b16 %v467, %v465
        %v500 = vpack.c.b16 %v468, %v466
        %533 = vmatprep.subr.bf16.mxu0 %v484
        %534 = vmatpush1.bf16.msra.mxu0 %v483
        %535 = vmatprep.subr.bf16.mxu0 %v482
        %536 = vmatpush1.bf16.msra.mxu0 %v481
        %537 = vmatprep.subr.bf16.mxu0 %v480
        %538 = vmatpush1.bf16.msra.mxu0 %v479
        %539 = vmatprep.subr.bf16.mxu0 %v478
        %540 = vmatpush1.bf16.msra.mxu0 %v477
        %541 = vmatprep.subr.bf16.mxu0 %v476
        %542 = vmatpush1.bf16.msra.mxu0 %v475
        %543 = vmatprep.subr.bf16.mxu0 %v474
        %544 = vmatpush1.bf16.msra.mxu0 %v473
        %545 = vmatprep.subr.bf16.mxu0 %v472
        %546 = vmatpush1.bf16.msra.mxu0 %v471
        %547 = vmatprep.subr.bf16.mxu0 %v470
        %548 = vmatpush1.bf16.msra.mxu0 %v469
        %549 = vmatprep.subr.bf16.mxu0 %v500
        %550 = vmatpush2.bf16.msra.mxu0 %v499
        %551 = vmatprep.subr.bf16.mxu0 %v498
        %552 = vmatpush2.bf16.msra.mxu0 %v497
        %553 = vmatprep.subr.bf16.mxu0 %v496
        %554 = vmatpush2.bf16.msra.mxu0 %v495
        %555 = vmatprep.subr.bf16.mxu0 %v494
        %556 = vmatpush2.bf16.msra.mxu0 %v493
        %557 = vmatprep.subr.bf16.mxu0 %v492
        %558 = vmatpush2.bf16.msra.mxu0 %v491
        %559 = vmatprep.subr.bf16.mxu0 %v490
        %560 = vmatpush2.bf16.msra.mxu0 %v489
        %561 = vmatprep.subr.bf16.mxu0 %v488
        %562 = vmatpush2.bf16.msra.mxu0 %v487
        %563 = vmatprep.subr.bf16.mxu0 %v486
        %564 = vmatpush2.bf16.msra.mxu0 %v485
        %565 = vmatprep.mubr.bf16.mxu0 %v328
        %566 = vmatmul.mubr.bf16.gmra.mxu0 %v327
        %v567 = vpop.f32.mrf.mxu0
        %v568 = vadd.f32 %v366, %v567
        %v569 = vpop.f32.mrf.mxu0
        %v570 = vadd.f32 %v370, %v569
        %v571 = vpop.f32.mrf.mxu0
        %v572 = vpop.f32.mrf.mxu0
        %573 = vdwg.mxu0
        %v574 = vmax.f32 %v568, 0.0
        %v575 = vmax.f32 %v570, 0.0
        %s576 = sshra.s32 %s324, 7
        %s577 = sand.u32 %s324, 127
        %s578 = smul.addr %s576, 8
        %s579 = scalar_lea.vmem [#allocation3], %s578
        %580 = vst [vmem:[%s579] sm:$0xff] %v574
        %581 = vst [vmem:[%s579 + $0x8] sm:$0xff] %v575
        %p582 = scmp.lt.s32.totalorder %s26, 3
        %p583 = pnand %p315, %p582
        %p584 = pneg %p583
        // Predicated region
        $region49: #{large_mlp_forward.1} parent=39 // pred_check
          _
        $region50: #{large_mlp_forward.1} parent=39 // pred_check_branch
          %586 = sbr.rel (%p583) target = $region52
        $region51: #{large_mlp_forward.1} parent=39 // pred_region
          %v587 = vld [vmem:[#allocation3] sm:$0xff]
          %v588 = vld [vmem:[#allocation3 + $0x8] sm:$0xff]
          %589 = vst [vmem:[#allocation2] sm:$0xff] %v587
          %590 = vst [vmem:[#allocation2 + $0x8] sm:$0xff] %v588
        $region52: #{large_mlp_forward.1} parent=39 // pred_fallthru
          _
        %p591 = scmp.eq.s32.totalorder %s26, 3
        %p592 = pnand %p591, %p315
        %p593 = pneg %p592
        // Predicated region
        $region53: #{large_mlp_forward.1} parent=39 // pred_check
          _
        $region54: #{large_mlp_forward.1} parent=39 // pred_check_branch
          %595 = sbr.rel (%p592) target = $region56
        $region55: #{large_mlp_forward.1} parent=39 // pred_region
          %v596 = vld [vmem:[#allocation3] sm:$0xff]
          %v597 = vld [vmem:[#allocation3 + $0x8] sm:$0xff]
          %v598 = vpack.c.bf16 %v596, %v596
          %v599 = vpack.c.bf16 %v597, %v597
          %v600 = vld [vmem:[%s3] sm:$0xf]
          %v601 = vld [vmem:[%s3 + $0x4] sm:$0xf]
          %v602 = vld [vmem:[%s3 + $0x8] sm:$0xf]
          %v603 = vld [vmem:[%s3 + $0xc] sm:$0xf]
          %v604 = vld [vmem:[%s3 + $0x10] sm:$0xf]
          %v605 = vld [vmem:[%s3 + $0x14] sm:$0xf]
          %v606 = vld [vmem:[%s3 + $0x18] sm:$0xf]
          %v607 = vld [vmem:[%s3 + $0x1c] sm:$0xf]
          %v608 = vld [vmem:[%s3 + $0x20] sm:$0xf]
          %v609 = vld [vmem:[%s3 + $0x24] sm:$0xf]
          %v610 = vld [vmem:[%s3 + $0x28] sm:$0xf]
          %v611 = vld [vmem:[%s3 + $0x2c] sm:$0xf]
          %v612 = vld [vmem:[%s3 + $0x30] sm:$0xf]
          %v613 = vld [vmem:[%s3 + $0x34] sm:$0xf]
          %v614 = vld [vmem:[%s3 + $0x38] sm:$0xf]
          %v615 = vld [vmem:[%s3 + $0x3c] sm:$0xf]
          %v616 = vld [vmem:[%s3 + $0x40] sm:$0xf]
          %v617 = vld [vmem:[%s3 + $0x44] sm:$0xf]
          %v618 = vld [vmem:[%s3 + $0x48] sm:$0xf]
          %v619 = vld [vmem:[%s3 + $0x4c] sm:$0xf]
          %v620 = vld [vmem:[%s3 + $0x50] sm:$0xf]
          %v621 = vld [vmem:[%s3 + $0x54] sm:$0xf]
          %v622 = vld [vmem:[%s3 + $0x58] sm:$0xf]
          %v623 = vld [vmem:[%s3 + $0x5c] sm:$0xf]
          %v624 = vld [vmem:[%s3 + $0x60] sm:$0xf]
          %v625 = vld [vmem:[%s3 + $0x64] sm:$0xf]
          %v626 = vld [vmem:[%s3 + $0x68] sm:$0xf]
          %v627 = vld [vmem:[%s3 + $0x6c] sm:$0xf]
          %v628 = vld [vmem:[%s3 + $0x70] sm:$0xf]
          %v629 = vld [vmem:[%s3 + $0x74] sm:$0xf]
          %v630 = vld [vmem:[%s3 + $0x78] sm:$0xf]
          %v631 = vld [vmem:[%s3 + $0x7c] sm:$0xf]
          %v632 = vld [vmem:[%s4] sm:$0x1]
          %v634 = vlaneseq
          %v635 = vshrl.u32 %v634, 7
          %v636 = vsub.s32 0, %v635
          %v637 = vrot.slane %v632, %v636
          %v671 = vunpack.c.l.b16 %v600
          %v672 = vunpack.c.l.b16 %v601
          %v673 = vunpack.c.l.b16 %v602
          %v674 = vunpack.c.l.b16 %v603
          %v675 = vunpack.c.l.b16 %v604
          %v676 = vunpack.c.l.b16 %v605
          %v677 = vunpack.c.l.b16 %v606
          %v678 = vunpack.c.l.b16 %v607
          %v679 = vunpack.c.l.b16 %v608
          %v680 = vunpack.c.l.b16 %v609
          %v681 = vunpack.c.l.b16 %v610
          %v682 = vunpack.c.l.b16 %v611
          %v683 = vunpack.c.l.b16 %v612
          %v684 = vunpack.c.l.b16 %v613
          %v685 = vunpack.c.l.b16 %v614
          %v686 = vunpack.c.l.b16 %v615
          %v687 = vunpack.c.l.b16 %v616
          %v688 = vunpack.c.l.b16 %v617
          %v689 = vunpack.c.l.b16 %v618
          %v690 = vunpack.c.l.b16 %v619
          %v691 = vunpack.c.l.b16 %v620
          %v692 = vunpack.c.l.b16 %v621
          %v693 = vunpack.c.l.b16 %v622
          %v694 = vunpack.c.l.b16 %v623
          %v695 = vunpack.c.l.b16 %v624
          %v696 = vunpack.c.l.b16 %v625
          %v697 = vunpack.c.l.b16 %v626
          %v698 = vunpack.c.l.b16 %v627
          %v699 = vunpack.c.l.b16 %v628
          %v700 = vunpack.c.l.b16 %v629
          %v701 = vunpack.c.l.b16 %v630
          %v702 = vunpack.c.l.b16 %v631
          %v703 = vpack.c.b16 %v672, %v671
          %v704 = vpack.c.b16 %v674, %v673
          %v705 = vpack.c.b16 %v676, %v675
          %v706 = vpack.c.b16 %v678, %v677
          %v707 = vpack.c.b16 %v680, %v679
          %v708 = vpack.c.b16 %v682, %v681
          %v709 = vpack.c.b16 %v684, %v683
          %v710 = vpack.c.b16 %v686, %v685
          %v711 = vpack.c.b16 %v688, %v687
          %v712 = vpack.c.b16 %v690, %v689
          %v713 = vpack.c.b16 %v692, %v691
          %v714 = vpack.c.b16 %v694, %v693
          %v715 = vpack.c.b16 %v696, %v695
          %v716 = vpack.c.b16 %v698, %v697
          %v717 = vpack.c.b16 %v700, %v699
          %v718 = vpack.c.b16 %v702, %v701
          %735 = vmatprep.subr.bf16.mxu0 0
          %736 = vmatpush1.bf16.msra.mxu0 %v710
          %737 = vmatprep.subr.bf16.mxu0 0
          %738 = vmatpush1.bf16.msra.mxu0 %v709
          %739 = vmatprep.subr.bf16.mxu0 0
          %740 = vmatpush1.bf16.msra.mxu0 %v708
          %741 = vmatprep.subr.bf16.mxu0 0
          %742 = vmatpush1.bf16.msra.mxu0 %v707
          %743 = vmatprep.subr.bf16.mxu0 0
          %744 = vmatpush1.bf16.msra.mxu0 %v706
          %745 = vmatprep.subr.bf16.mxu0 0
          %746 = vmatpush1.bf16.msra.mxu0 %v705
          %747 = vmatprep.subr.bf16.mxu0 0
          %748 = vmatpush1.bf16.msra.mxu0 %v704
          %749 = vmatprep.subr.bf16.mxu0 0
          %750 = vmatpush1.bf16.msra.mxu0 %v703
          %751 = vmatprep.subr.bf16.mxu0 0
          %752 = vmatpush2.bf16.msra.mxu0 %v718
          %753 = vmatprep.subr.bf16.mxu0 0
          %754 = vmatpush2.bf16.msra.mxu0 %v717
          %755 = vmatprep.subr.bf16.mxu0 0
          %756 = vmatpush2.bf16.msra.mxu0 %v716
          %757 = vmatprep.subr.bf16.mxu0 0
          %758 = vmatpush2.bf16.msra.mxu0 %v715
          %759 = vmatprep.subr.bf16.mxu0 0
          %760 = vmatpush2.bf16.msra.mxu0 %v714
          %761 = vmatprep.subr.bf16.mxu0 0
          %762 = vmatpush2.bf16.msra.mxu0 %v713
          %763 = vmatprep.subr.bf16.mxu0 0
          %764 = vmatpush2.bf16.msra.mxu0 %v712
          %765 = vmatprep.subr.bf16.mxu0 0
          %766 = vmatpush2.bf16.msra.mxu0 %v711
          %767 = vmatprep.mubr.bf16.mxu0 %v599
          %768 = vmatmul.mubr.bf16.gmra.mxu0 %v598
          %v769 = vpop.f32.mrf.mxu0
          %v770 = vadd.f32 %v637, %v769
          %v771 = vpop.f32.mrf.mxu0
          %v772 = vpop.f32.mrf.mxu0
          %v773 = vpop.f32.mrf.mxu0
          %774 = vdwg.mxu0
          %775 = vst [vmem:[#allocation7] sm:$0xff] %v770
        $region56: #{large_mlp_forward.1} parent=39 // pred_fallthru
          _
        // Predicated region
        $region57: #{large_mlp_forward.1} parent=39 // pred_check
          %p776 = pneg %p181
        $region58: #{large_mlp_forward.1} parent=39 // pred_check_branch
          %778 = sbr.rel (%p776) target = $region60
        $region59: #{large_mlp_forward.1} parent=39 // pred_region
          %s780 = ssub.s32 128, 128
          %781 = vsyncadd [#allocation6], %s780
          %s782 = smul.addr %s25, 128
          %s783 = scalar_lea.hbm %s5, %s782
          %s785 = sshll.u32 [#allocation7], 4
          %s786 = int_to_ptr.vmem [resolvable:$true] %s785
          %788 = dma.vmem_to_hbm [thread:$0]  %s786, 128, %s783, [#allocation6]
        $region60: #{large_mlp_forward.1} parent=39 // pred_fallthru
          _
        // Predicated region
        $region61: #{large_mlp_forward.1} parent=39 // pred_check
          %p789 = pneg %p181
        $region62: #{large_mlp_forward.1} parent=39 // pred_check_branch
          %791 = sbr.rel (%p789) target = $region64
        $region63: #{large_mlp_forward.1} parent=39 // pred_region
          %792 = dma.done [#allocation6], 128
        $region64: #{large_mlp_forward.1} parent=39 // pred_fallthru
          _
      $region40: #{large_mlp_forward.1} parent=5 // pred_fallthru
        _
      %p793 = scmp.le.s32.totalorder 2, %s15
      // Predicated region
      $region65: #{large_mlp_forward.1} parent=5 // pred_check
        %p794 = pneg %p793
      $region66: #{large_mlp_forward.1} parent=5 // pred_check_branch
        %796 = sbr.rel (%p794) target = $region68
      $region67: #{large_mlp_forward.1} parent=5 // pred_region
        %s797 = ssub.s32 %s15, 2
      $region68: #{large_mlp_forward.1} parent=5 // pred_fallthru
        _
    $region6: #{large_mlp_forward.1} parent=1 // loop_footer
      %s19 = sadd.s32 1, %s15
    $region7: #{large_mlp_forward.1} parent=1 // loop_footer_branch
      %14 = sbr.rel target = $region3
    $region8: #{large_mlp_forward.1} parent=1 // loop_exit
      _
    %798 = vsyncpa [#allocation5], 1
    %s799 = scalar_lea.sflag [#allocation5], 1
    %800 = vsyncpa %s799, 1
    %801 = vsyncpa [#allocation6], 1
    %s802 = scalar_lea.sflag [#allocation6], 1
    %803 = vsyncpa %s802, 1

</llo_original>
